<compile_context>
chip_gen: v7x
topology: tpu7x:2x2x1
jax: 0.10.0
libtpu: 0.0.40
codegen_flags: <defaults>
</compile_context>

<pallas_src>
import math

import jax
import jax.numpy as jnp
from jax.experimental import pallas as pl
from jax.experimental.pallas import tpu as pltpu

MIN_SNR_DB, MAX_SNR_DB = 3.0, 30.0      # torch_audiomentations defaults
MIN_F_DECAY, MAX_F_DECAY = -2.0, 2.0    # torch_audiomentations defaults
SAMPLE_RATE = 16000                     # torch_audiomentations default (125 * 128)

_LANES = 128
_SUBLANES_F32 = 8


def _make_add_noise_kernel(batch_axis, reps, period_rows):
    """out = audio + scale[b] * base (tiled periodically) on one (1, t_rows, 128) tile."""

    def kernel(scale_ref, audio_ref, base_ref, out_ref):
        b = pl.program_id(batch_axis)
        scaled_base = scale_ref[b] * base_ref[0]            # (period_rows, 128) f32
        for j in range(reps):                               # static unroll: whole periods
            rows = pl.ds(j * period_rows, period_rows)
            a = audio_ref[0, rows, :].astype(jnp.float32)
            out_ref[0, rows, :] = (a + scaled_base).astype(out_ref.dtype)

    return kernel


def add_colored_noise(audio, noise_base, snr_db, *, rows_per_tile=8192):
    """audio: [B, T]; noise_base: [B, sample_rate] RMS-normalized colored noise (the
    periodic base, NOT tiled to T); snr_db: [B]."""
    B, T = audio.shape
    out_dtype = audio.dtype
    P = noise_base.shape[-1]
    assert P % _LANES == 0, "noise base length must be a multiple of 128"
    period_rows = P // _LANES                                # 125 for 16 kHz

    # Per-example scale: tiny [B] reduction, left to XLA.
    rms = jnp.sqrt(jnp.mean(jnp.square(audio.astype(jnp.float32)), axis=-1))     # [B]
    scale = (rms / (10.0 ** (snr_db.astype(jnp.float32) / 20.0))).astype(jnp.float32)

    # Pad T only to the next multiple of 128 (<=127 samples); no tile-sized rounding.
    rows_total = pl.cdiv(T, _LANES)
    T_pad = rows_total * _LANES
    audio_r = audio
    if T_pad != T:
        audio_r = jnp.pad(audio, ((0, 0), (0, T_pad - T)))
    audio_r = audio_r.reshape(B, rows_total, _LANES)         # metadata-only when no pad

    base_r = noise_base.astype(jnp.float32).reshape(B, period_rows, _LANES)

    # dtype-aware min sublane count: 8 (f32), 16 (bf16/f16), 32 (int8/fp8).
    itemsize = jnp.dtype(out_dtype).itemsize
    sublanes = _SUBLANES_F32 * max(1, 4 // itemsize)

    # Tile row granularity: whole noise periods AND a multiple of the min sublane tile.
    unit = period_rows * sublanes // math.gcd(period_rows, sublanes)   # lcm
    t_rows = max(unit, (rows_per_tile // unit) * unit)
    t_rows = min(t_rows, pl.cdiv(rows_total, unit) * unit)   # never huger than needed
    reps = t_rows // period_rows
    nt = pl.cdiv(rows_total, t_rows)                         # partial last block allowed

    # Put the bigger extent first so the megacore "parallel" split (v7x) stays busy.
    if nt >= B:
        grid = (nt, B)
        batch_axis = 1
        tile_map = lambda t, b, s_ref: (b, t, 0)
        base_map = lambda t, b, s_ref: (b, 0, 0)
    else:
        grid = (B, nt)
        batch_axis = 0
        tile_map = lambda b, t, s_ref: (b, t, 0)
        base_map = lambda b, t, s_ref: (b, 0, 0)              # constant along time -> VMEM-resident

    tile_spec = pl.BlockSpec((1, t_rows, _LANES), tile_map)
    base_spec = pl.BlockSpec((1, period_rows, _LANES), base_map)

    out = pl.pallas_call(
        _make_add_noise_kernel(batch_axis, reps, period_rows),
        out_shape=jax.ShapeDtypeStruct((B, rows_total, _LANES), out_dtype),
        grid_spec=pltpu.PrefetchScalarGridSpec(
            num_scalar_prefetch=1,                 # scale -> SMEM
            grid=grid,
            in_specs=[tile_spec, base_spec],
            out_specs=tile_spec,
        ),
        compiler_params=pltpu.CompilerParams(
            dimension_semantics=("parallel", "parallel"),
            vmem_limit_bytes=32 * 1024 * 1024,     # safe on v5e/v6e/v7x; usage ~16 MiB
        ),
        cost_estimate=pl.CostEstimate(
            flops=2 * B * T_pad,
            transcendentals=0,
            bytes_accessed=2 * B * T_pad * itemsize + B * P * 4,
        ),
    )(scale, audio_r, base_r)

    out = out.reshape(B, T_pad)
    if T_pad != T:
        out = out[:, :T]
    return out


def gen_colored_noise_base(key, f_decay, sample_rate=SAMPLE_RATE):
    """JAX port of torch_audiomentations.AddColoredNoise._gen_noise, returning only the
    sample_rate-length periodic base (the kernel tiles it to T implicitly)."""
    # TODO(synk): rFFT/irFFT have no Pallas TPU primitive; noise synthesis stays in XLA.
    white = jax.random.normal(key, (sample_rate,), dtype=jnp.float32)
    spec = jnp.fft.rfft(white)
    freqs = jnp.linspace(1.0, (sample_rate / 2.0) ** 0.5, spec.shape[0])
    colored = jnp.fft.irfft(spec * (1.0 / (freqs ** f_decay)), n=sample_rate)
    # Audio.rms_normalize
    colored = colored / (jnp.sqrt(jnp.mean(colored ** 2)) + 1e-8)
    return colored.astype(jnp.float32)


if __name__ == "__main__":
    B = 4
    T = 8 * SAMPLE_RATE      # 8 s @ 16 kHz = 128000 samples = 8 noise periods (small demo)

    key = jax.random.PRNGKey(0)
    k_audio, k_snr, k_fd, k_noise = jax.random.split(key, 4)

    audio = jax.random.normal(k_audio, (B, T), dtype=jnp.float32)
    snr_db = jax.random.uniform(k_snr, (B,), minval=MIN_SNR_DB, maxval=MAX_SNR_DB)
    f_decay = jax.random.uniform(k_fd, (B,), minval=MIN_F_DECAY, maxval=MAX_F_DECAY)

    # vmap over batch: one fused XLA program for all per-example FFT noise bases.
    noise_keys = jax.random.split(k_noise, B)
    noise_base = jax.vmap(lambda k, fd: gen_colored_noise_base(k, fd))(noise_keys, f_decay)

    out = jax.block_until_ready(add_colored_noise(audio, noise_base, snr_db))

    # Pure-JAX reference of the hot path (tile the base to T explicitly).
    n_reps = -(-T // SAMPLE_RATE)
    noise_full = jnp.tile(noise_base, (1, n_reps))[:, :T]
    rms = jnp.sqrt(jnp.mean(audio ** 2, axis=-1, keepdims=True))
    ref = audio + (rms / (10.0 ** (snr_db[:, None] / 20.0))) * noise_full

    assert out.shape == audio.shape and out.dtype == audio.dtype
    assert jnp.allclose(out, ref, atol=1e-5, rtol=1e-5)

    print("KERNEL_OK")
</pallas_src>

<mosaic_0001>
module attributes {stable_mosaic.version = 11 : i64} {
  func.func @kernel(%arg0: i32, %arg1: i32, %arg2: memref<4xf32, #tpu.memory_space<smem>>, %arg3: memref<1x1000x128xf32, #tpu.memory_space<vmem>>, %arg4: memref<1x125x128xf32, #tpu.memory_space<vmem>>, %arg5: memref<1x1000x128xf32, #tpu.memory_space<vmem>>) attributes {dimension_semantics = [#tpu.dimension_semantics<parallel>, #tpu.dimension_semantics<parallel>], iteration_bounds = array<i64: 4, 1>, scalar_prefetch = 1 : i64, scratch_operands = 0 : i64, tpu.core_type = #tpu.core_type<tc>, window_params = [{transform_indices = @transform_0, window_bounds = array<i64: 1, 1000, 128>}, {transform_indices = @transform_1, window_bounds = array<i64: 1, 125, 128>}, {transform_indices = @transform_2, window_bounds = array<i64: 1, 1000, 128>}]} {
    %0 = arith.index_cast %arg0 : i32 to index
    %1 = memref.load %arg2[%0] : memref<4xf32, #tpu.memory_space<smem>>
    %c0 = arith.constant 0 : index
    %c0_0 = arith.constant 0 : index
    %c0_1 = arith.constant 0 : index
    %2 = vector.load %arg4[%c0, %c0_0, %c0_1] : memref<1x125x128xf32, #tpu.memory_space<vmem>>, vector<1x125x128xf32>
    %3 = vector.shape_cast %2 : vector<1x125x128xf32> to vector<125x128xf32>
    %4 = vector.broadcast %1 : f32 to vector<125x128xf32>
    %5 = arith.mulf %4, %3 : vector<125x128xf32>
    %c0_2 = arith.constant 0 : index
    %c0_3 = arith.constant 0 : index
    %c0_4 = arith.constant 0 : index
    %6 = vector.load %arg3[%c0_2, %c0_3, %c0_4] : memref<1x1000x128xf32, #tpu.memory_space<vmem>>, vector<1x125x128xf32>
    %7 = vector.shape_cast %6 : vector<1x125x128xf32> to vector<125x128xf32>
    %8 = arith.addf %7, %5 : vector<125x128xf32>
    %c0_5 = arith.constant 0 : index
    %c0_6 = arith.constant 0 : index
    %c0_7 = arith.constant 0 : index
    %9 = vector.load %arg5[%c0_5, %c0_6, %c0_7] : memref<1x1000x128xf32, #tpu.memory_space<vmem>>, vector<1x125x128xf32>
    %10 = vector.shape_cast %9 : vector<1x125x128xf32> to vector<125x128xf32>
    %11 = vector.shape_cast %8 : vector<125x128xf32> to vector<1x125x128xf32>
    tpu.vector_store %arg5[%c0_5, %c0_6, %c0_7], %11 {strides = array<i32>} : memref<1x1000x128xf32, #tpu.memory_space<vmem>>, vector<1x125x128xf32>,
    %c0_8 = arith.constant 0 : index
    %c125 = arith.constant 125 : index
    %c0_9 = arith.constant 0 : index
    %12 = vector.load %arg3[%c0_8, %c125, %c0_9] : memref<1x1000x128xf32, #tpu.memory_space<vmem>>, vector<1x125x128xf32>
    %13 = vector.shape_cast %12 : vector<1x125x128xf32> to vector<125x128xf32>
    %14 = arith.addf %13, %5 : vector<125x128xf32>
    %c0_10 = arith.constant 0 : index
    %c125_11 = arith.constant 125 : index
    %c0_12 = arith.constant 0 : index
    %15 = vector.load %arg5[%c0_10, %c125_11, %c0_12] : memref<1x1000x128xf32, #tpu.memory_space<vmem>>, vector<1x125x128xf32>
    %16 = vector.shape_cast %15 : vector<1x125x128xf32> to vector<125x128xf32>
    %17 = vector.shape_cast %14 : vector<125x128xf32> to vector<1x125x128xf32>
    tpu.vector_store %arg5[%c0_10, %c125_11, %c0_12], %17 {strides = array<i32>} : memref<1x1000x128xf32, #tpu.memory_space<vmem>>, vector<1x125x128xf32>,
    %c0_13 = arith.constant 0 : index
    %c250 = arith.constant 250 : index
    %c0_14 = arith.constant 0 : index
    %18 = vector.load %arg3[%c0_13, %c250, %c0_14] : memref<1x1000x128xf32, #tpu.memory_space<vmem>>, vector<1x125x128xf32>
    %19 = vector.shape_cast %18 : vector<1x125x128xf32> to vector<125x128xf32>
    %20 = arith.addf %19, %5 : vector<125x128xf32>
    %c0_15 = arith.constant 0 : index
    %c250_16 = arith.constant 250 : index
    %c0_17 = arith.constant 0 : index
    %21 = vector.load %arg5[%c0_15, %c250_16, %c0_17] : memref<1x1000x128xf32, #tpu.memory_space<vmem>>, vector<1x125x128xf32>
    %22 = vector.shape_cast %21 : vector<1x125x128xf32> to vector<125x128xf32>
    %23 = vector.shape_cast %20 : vector<125x128xf32> to vector<1x125x128xf32>
    tpu.vector_store %arg5[%c0_15, %c250_16, %c0_17], %23 {strides = array<i32>} : memref<1x1000x128xf32, #tpu.memory_space<vmem>>, vector<1x125x128xf32>,
    %c0_18 = arith.constant 0 : index
    %c375 = arith.constant 375 : index
    %c0_19 = arith.constant 0 : index
    %24 = vector.load %arg3[%c0_18, %c375, %c0_19] : memref<1x1000x128xf32, #tpu.memory_space<vmem>>, vector<1x125x128xf32>
    %25 = vector.shape_cast %24 : vector<1x125x128xf32> to vector<125x128xf32>
    %26 = arith.addf %25, %5 : vector<125x128xf32>
    %c0_20 = arith.constant 0 : index
    %c375_21 = arith.constant 375 : index
    %c0_22 = arith.constant 0 : index
    %27 = vector.load %arg5[%c0_20, %c375_21, %c0_22] : memref<1x1000x128xf32, #tpu.memory_space<vmem>>, vector<1x125x128xf32>
    %28 = vector.shape_cast %27 : vector<1x125x128xf32> to vector<125x128xf32>
    %29 = vector.shape_cast %26 : vector<125x128xf32> to vector<1x125x128xf32>
    tpu.vector_store %arg5[%c0_20, %c375_21, %c0_22], %29 {strides = array<i32>} : memref<1x1000x128xf32, #tpu.memory_space<vmem>>, vector<1x125x128xf32>,
    %c0_23 = arith.constant 0 : index
    %c500 = arith.constant 500 : index
    %c0_24 = arith.constant 0 : index
    %30 = vector.load %arg3[%c0_23, %c500, %c0_24] : memref<1x1000x128xf32, #tpu.memory_space<vmem>>, vector<1x125x128xf32>
    %31 = vector.shape_cast %30 : vector<1x125x128xf32> to vector<125x128xf32>
    %32 = arith.addf %31, %5 : vector<125x128xf32>
    %c0_25 = arith.constant 0 : index
    %c500_26 = arith.constant 500 : index
    %c0_27 = arith.constant 0 : index
    %33 = vector.load %arg5[%c0_25, %c500_26, %c0_27] : memref<1x1000x128xf32, #tpu.memory_space<vmem>>, vector<1x125x128xf32>
    %34 = vector.shape_cast %33 : vector<1x125x128xf32> to vector<125x128xf32>
    %35 = vector.shape_cast %32 : vector<125x128xf32> to vector<1x125x128xf32>
    tpu.vector_store %arg5[%c0_25, %c500_26, %c0_27], %35 {strides = array<i32>} : memref<1x1000x128xf32, #tpu.memory_space<vmem>>, vector<1x125x128xf32>,
    %c0_28 = arith.constant 0 : index
    %c625 = arith.constant 625 : index
    %c0_29 = arith.constant 0 : index
    %36 = vector.load %arg3[%c0_28, %c625, %c0_29] : memref<1x1000x128xf32, #tpu.memory_space<vmem>>, vector<1x125x128xf32>
    %37 = vector.shape_cast %36 : vector<1x125x128xf32> to vector<125x128xf32>
    %38 = arith.addf %37, %5 : vector<125x128xf32>
    %c0_30 = arith.constant 0 : index
    %c625_31 = arith.constant 625 : index
    %c0_32 = arith.constant 0 : index
    %39 = vector.load %arg5[%c0_30, %c625_31, %c0_32] : memref<1x1000x128xf32, #tpu.memory_space<vmem>>, vector<1x125x128xf32>
    %40 = vector.shape_cast %39 : vector<1x125x128xf32> to vector<125x128xf32>
    %41 = vector.shape_cast %38 : vector<125x128xf32> to vector<1x125x128xf32>
    tpu.vector_store %arg5[%c0_30, %c625_31, %c0_32], %41 {strides = array<i32>} : memref<1x1000x128xf32, #tpu.memory_space<vmem>>, vector<1x125x128xf32>,
    %c0_33 = arith.constant 0 : index
    %c750 = arith.constant 750 : index
    %c0_34 = arith.constant 0 : index
    %42 = vector.load %arg3[%c0_33, %c750, %c0_34] : memref<1x1000x128xf32, #tpu.memory_space<vmem>>, vector<1x125x128xf32>
    %43 = vector.shape_cast %42 : vector<1x125x128xf32> to vector<125x128xf32>
    %44 = arith.addf %43, %5 : vector<125x128xf32>
    %c0_35 = arith.constant 0 : index
    %c750_36 = arith.constant 750 : index
    %c0_37 = arith.constant 0 : index
    %45 = vector.load %arg5[%c0_35, %c750_36, %c0_37] : memref<1x1000x128xf32, #tpu.memory_space<vmem>>, vector<1x125x128xf32>
    %46 = vector.shape_cast %45 : vector<1x125x128xf32> to vector<125x128xf32>
    %47 = vector.shape_cast %44 : vector<125x128xf32> to vector<1x125x128xf32>
    tpu.vector_store %arg5[%c0_35, %c750_36, %c0_37], %47 {strides = array<i32>} : memref<1x1000x128xf32, #tpu.memory_space<vmem>>, vector<1x125x128xf32>,
    %c0_38 = arith.constant 0 : index
    %c875 = arith.constant 875 : index
    %c0_39 = arith.constant 0 : index
    %48 = vector.load %arg3[%c0_38, %c875, %c0_39] : memref<1x1000x128xf32, #tpu.memory_space<vmem>>, vector<1x125x128xf32>
    %49 = vector.shape_cast %48 : vector<1x125x128xf32> to vector<125x128xf32>
    %50 = arith.addf %49, %5 : vector<125x128xf32>
    %c0_40 = arith.constant 0 : index
    %c875_41 = arith.constant 875 : index
    %c0_42 = arith.constant 0 : index
    %51 = vector.load %arg5[%c0_40, %c875_41, %c0_42] : memref<1x1000x128xf32, #tpu.memory_space<vmem>>, vector<1x125x128xf32>
    %52 = vector.shape_cast %51 : vector<1x125x128xf32> to vector<125x128xf32>
    %53 = vector.shape_cast %50 : vector<125x128xf32> to vector<1x125x128xf32>
    tpu.vector_store %arg5[%c0_40, %c875_41, %c0_42], %53 {strides = array<i32>} : memref<1x1000x128xf32, #tpu.memory_space<vmem>>, vector<1x125x128xf32>,
    return
  }
  func.func @transform_0(%arg0: i32, %arg1: i32, %arg2: memref<4xf32, #tpu.memory_space<smem>>) -> (i32, i32, i32) {
    %c0_i32 = arith.constant 0 : i32
    %c0_i32_0 = arith.constant 0 : i32
    return %arg0, %arg1, %c0_i32 : i32, i32, i32
  }
  func.func @transform_1(%arg0: i32, %arg1: i32, %arg2: memref<4xf32, #tpu.memory_space<smem>>) -> (i32, i32, i32) {
    %c0_i32 = arith.constant 0 : i32
    %c0_i32_0 = arith.constant 0 : i32
    %c0_i32_1 = arith.constant 0 : i32
    return %arg0, %c0_i32, %c0_i32_0 : i32, i32, i32
  }
  func.func @transform_2(%arg0: i32, %arg1: i32, %arg2: memref<4xf32, #tpu.memory_space<smem>>) -> (i32, i32, i32) {
    %c0_i32 = arith.constant 0 : i32
    %c0_i32_0 = arith.constant 0 : i32
    return %arg0, %arg1, %c0_i32 : i32, i32, i32
  }
}

</mosaic_0001>

<llo_original>
// kernel: tpu_custom_call.1
$region0: #{tpu_custom_call.1}
  #allocation0 [shape = 'u32[]', space=smem, size = 0x4, offset = 0x4, fixed_abs, tag = 'smem constant byte address 0x4 - core index']
  #allocation1 [shape = 'u32[144,128]{1,0:T(1,128)}', space=vmem, size = 0x12000, scoped, tag = 'internal scratch']
  #allocation2 [shape = 's32[1]{0}', space=sflag, size = 0x4, scoped, tag = 'scoped memory for tpu_custom_call.1']
  #allocation3 [shape = 'u8[512]{0}', space=smem, size = 0x200, scoped, tag = 'prefetched SMEM operand 0']
  %s0 = inlined_call_operand.hbm [shape: f32[4], index: 0, kind: input, shape index: {}]
  %s1 = inlined_call_operand.hbm [shape: f32[4,1000,128], index: 1, kind: input, shape index: {}]
  %s2 = inlined_call_operand.vmem [shape: f32[4,125,128], index: 2, kind: input, shape index: {}]
  %s3 = inlined_call_operand.hbm [shape: f32[4,1000,128], index: 3, kind: output, shape index: {}]
  %s4 = sld [smem:[#allocation0]]
  $region45: #{tpu_custom_call.1} parent=0
    _
  %s6 = ssub.s32 1, %s4
  %s7 = scalar_select 0, %s6, %s4
  %9 = dma.hbm_to_smem %s0, 16, [#allocation3], [#allocation2]
  %10 = dma.done [#allocation2], 16
  %11 = sfence
  $region1: #{tpu_custom_call.1} parent=0
    #allocation4 [shape = 'u8[1024000]{0}', space=vmem, size = 0xfa000, scoped, tag = 'input window, operand 1']
    #allocation5 [shape = 's32[2]{0}', space=sflag, size = 0x8, scoped, tag = 'scoped memory for tpu_custom_call.1']
    #allocation6 [shape = 's32[2]{0}', space=sflag, size = 0x8, scoped, tag = 'scoped memory for tpu_custom_call.1']
    #allocation7 [shape = 'u8[1024000]{0}', space=vmem, size = 0xfa000, scoped, tag = 'output window, operand 0']
    %12 = vsyncpa [#allocation5], 0
    %s13 = scalar_lea.sflag [#allocation5], 1
    %14 = vsyncpa %s13, 0
    %15 = vsyncpa [#allocation6], 0
    %s16 = scalar_lea.sflag [#allocation6], 1
    %17 = vsyncpa %s16, 0
    loop: start=0, step=1, limit=6
    $region2: #{tpu_custom_call.1} parent=1 // loop_pre_header
      _
    $region3: #{tpu_custom_call.1} parent=1 // loop_header
      %s19 = sphi 0, %s23
      %p20 = scmp.ge.s32.totalorder %s19, 6
      %s26 = sphi 0, %s38
      %s27 = sphi 0, %s34
      %s28 = sphi 0, %s26
      %s29 = sphi 0, %s27
      %s30 = sphi 0, %s28
      %s31 = sphi 0, %s29
      %s43 = sphi 0, %s45
      %s46 = sphi 0, %s43
      %s47 = sphi 0, %s46
      %s63 = sphi 0, %s47
      %s69 = sphi 0, %s71
      %s72 = sphi 0, %s69
      %s73 = sphi 0, %s72
      %s89 = sphi 0, %s73
      %s97 = sphi 0, %s99
      %s100 = sphi 0, %s97
      %s101 = sphi 0, %s100
      %s117 = sphi 0, %s101
    $region4: #{tpu_custom_call.1} parent=1 // loop_header_branch
      %22 = sbr.rel (%p20) target = $region8
    $region5: #{tpu_custom_call.1} parent=1 // loop_body
      %s24 = ssub.s32 %s19, 1
      %s25 = ssub.s32 %s19, 2
      %s32 = sadd.s32 1, %s27
      %p33 = scmp.ge.s32.totalorder %s32, 1
      %s34 = scalar_select %p33, 0, %s32
      %s35 = sadd.s32 1, %s26
      %s36 = scalar_select %p33, %s35, %s26
      %p37 = scmp.ge.s32.totalorder %s36, 4
      %s38 = scalar_select %p37, 0, %s36
      %s39 = ssub.s32 %s26, %s38
      %s40 = ssub.s32 %s27, %s34
      %s41 = sor.u32 %s39, %s40
      %p42 = scmp.eq.s32.totalorder %s41, 0
      %s44 = sadd.s32 %s43, 1
      %s45 = scalar_select %p42, %s43, %s44
      %p48 = pneg %p42
      %p49 = scmp.eq.s32.totalorder %s19, 3
      %p50 = por %p48, %p49
      %p51 = scmp.ne.s32.totalorder %s43, %s46
      %p52 = scmp.eq.s32.totalorder %s19, 0
      %p53 = por %p51, %p52
      %p54 = scmp.ne.s32.totalorder %s43, %s46
      %p55 = scmp.eq.s32.totalorder %s24, 3
      %p56 = por %p54, %p55
      %p57 = scmp.ne.s32.totalorder %s46, %s47
      %p58 = scmp.eq.s32.totalorder %s24, 0
      %p59 = por %p57, %p58
      %p60 = scmp.ne.s32.totalorder %s46, %s47
      %p61 = scmp.eq.s32.totalorder %s25, 3
      %p62 = por %p60, %p61
      %p64 = scmp.ne.s32.totalorder %s47, %s63
      %p65 = scmp.eq.s32.totalorder %s25, 0
      %p66 = por %p64, %p65
      %s67 = ssub.s32 %s26, %s38
      %p68 = scmp.eq.s32.totalorder %s67, 0
      %s70 = sadd.s32 %s69, 1
      %s71 = scalar_select %p68, %s69, %s70
      %p74 = pneg %p68
      %p75 = scmp.eq.s32.totalorder %s19, 3
      %p76 = por %p74, %p75
      %p77 = scmp.ne.s32.totalorder %s69, %s72
      %p78 = scmp.eq.s32.totalorder %s19, 0
      %p79 = por %p77, %p78
      %p80 = scmp.ne.s32.totalorder %s69, %s72
      %p81 = scmp.eq.s32.totalorder %s24, 3
      %p82 = por %p80, %p81
      %p83 = scmp.ne.s32.totalorder %s72, %s73
      %p84 = scmp.eq.s32.totalorder %s24, 0
      %p85 = por %p83, %p84
      %p86 = scmp.ne.s32.totalorder %s72, %s73
      %p87 = scmp.eq.s32.totalorder %s25, 3
      %p88 = por %p86, %p87
      %p90 = scmp.ne.s32.totalorder %s73, %s89
      %p91 = scmp.eq.s32.totalorder %s25, 0
      %p92 = por %p90, %p91
      %s93 = ssub.s32 %s26, %s38
      %s94 = ssub.s32 %s27, %s34
      %s95 = sor.u32 %s93, %s94
      %p96 = scmp.eq.s32.totalorder %s95, 0
      %s98 = sadd.s32 %s97, 1
      %s99 = scalar_select %p96, %s97, %s98
      %p102 = pneg %p96
      %p103 = scmp.eq.s32.totalorder %s19, 3
      %p104 = por %p102, %p103
      %p105 = scmp.ne.s32.totalorder %s97, %s100
      %p106 = scmp.eq.s32.totalorder %s19, 0
      %p107 = por %p105, %p106
      %p108 = scmp.ne.s32.totalorder %s97, %s100
      %p109 = scmp.eq.s32.totalorder %s24, 3
      %p110 = por %p108, %p109
      %p111 = scmp.ne.s32.totalorder %s100, %s101
      %p112 = scmp.eq.s32.totalorder %s24, 0
      %p113 = por %p111, %p112
      %p114 = scmp.ne.s32.totalorder %s100, %s101
      %p115 = scmp.eq.s32.totalorder %s25, 3
      %p116 = por %p114, %p115
      %p118 = scmp.ne.s32.totalorder %s101, %s117
      %p119 = scmp.eq.s32.totalorder %s25, 0
      %p120 = por %p118, %p119
      %p121 = scmp.le.s32.totalorder 1, %s19
      %p122 = scmp.lt.s32.totalorder %s19, 5
      %p123 = pnand %p121, %p122
      %p124 = pneg %p123
      // Predicated region
      $region9: #{tpu_custom_call.1} parent=5 // pred_check
        _
      $region10: #{tpu_custom_call.1} parent=5 // pred_check_branch
        %126 = sbr.rel (%p123) target = $region12
      $region11: #{tpu_custom_call.1} parent=5 // pred_region
        %s127 = ssub.s32 %s19, 1
      $region12: #{tpu_custom_call.1} parent=5 // pred_fallthru
        _
      %p128 = scmp.lt.s32.totalorder %s19, 4
      // Predicated region
      $region13: #{tpu_custom_call.1} parent=5 // pred_check
        %p129 = pneg %p128
      $region14: #{tpu_custom_call.1} parent=5 // pred_check_branch
        %131 = sbr.rel (%p129) target = $region16
      $region15: #{tpu_custom_call.1} parent=5 // pred_region
        // Predicated region
        $region17: #{tpu_custom_call.1} parent=15 // pred_check
          %p132 = pneg %p53
        $region18: #{tpu_custom_call.1} parent=15 // pred_check_branch
          %134 = sbr.rel (%p132) target = $region20
        $region19: #{tpu_custom_call.1} parent=15 // pred_region
          %s135 = sand.u32 %s43, 1
          %s136 = scalar_lea.sflag [#allocation5], %s135
          %s137 = sand.u32 %s43, 1
          %s138 = smul.addr %s137, 1000
          %s139 = scalar_lea.vmem [#allocation4], %s138
          %s140 = smul.u32 125, %s27
          %s142 = ssub.s32 16000, 16000
          %143 = vsyncadd %s136, %s142
          %s144 = smul.addr %s26, 125
          %s145 = sadd.s32 %s140, %s144
          %s146 = smul.addr %s145, 128
          %s147 = scalar_lea.hbm %s1, %s146
          %s148 = sshll.u32 %s139, 4
          %s149 = int_to_ptr.vmem [resolvable:$true] %s148
          %154 = dma.hbm_to_vmem [thread:$0]  %s147, 16000, %s149, %s136, 128, 128, 8
        $region20: #{tpu_custom_call.1} parent=15 // pred_fallthru
          _
        // Predicated region
        $region21: #{tpu_custom_call.1} parent=15 // pred_check
          %p155 = pneg %p79
        $region22: #{tpu_custom_call.1} parent=15 // pred_check_branch
          %157 = sbr.rel (%p155) target = $region24
        $region23: #{tpu_custom_call.1} parent=15 // pred_region
          %p158 = scmp.lt.s32.totalorder %s26, 3
          %s159 = scalar_select %p158, %s26, 3
          %s160 = smul.addr %s159, 16
          %s161 = smul.addr %s160, 8
          %s162 = scalar_lea.vmem %s2, %s161
        $region24: #{tpu_custom_call.1} parent=15 // pred_fallthru
          _
      $region16: #{tpu_custom_call.1} parent=5 // pred_fallthru
        _
      %p163 = scmp.le.s32.totalorder 1, %s19
      %p164 = scmp.lt.s32.totalorder %s19, 5
      %p165 = pnand %p163, %p164
      %p166 = pneg %p165
      // Predicated region
      $region25: #{tpu_custom_call.1} parent=5 // pred_check
        _
      $region26: #{tpu_custom_call.1} parent=5 // pred_check_branch
        %168 = sbr.rel (%p165) target = $region28
      $region27: #{tpu_custom_call.1} parent=5 // pred_region
        %s169 = ssub.s32 %s19, 1
        %s170 = sand.u32 %s46, 1
        %s171 = scalar_lea.sflag [#allocation5], %s170
        %s172 = sand.u32 %s46, 1
        %s173 = smul.addr %s172, 1000
        %s174 = scalar_lea.vmem [#allocation4], %s173
        // Predicated region
        $region29: #{tpu_custom_call.1} parent=27 // pred_check
          %p175 = pneg %p59
        $region30: #{tpu_custom_call.1} parent=27 // pred_check_branch
          %177 = sbr.rel (%p175) target = $region32
        $region31: #{tpu_custom_call.1} parent=27 // pred_region
          %178 = dma.done %s171, 16000
        $region32: #{tpu_custom_call.1} parent=27 // pred_fallthru
          _
        %s179 = sand.u32 %s46, 1
        %s180 = scalar_lea.sflag [#allocation5], %s179
        %s181 = sand.u32 %s46, 1
        %s182 = smul.addr %s181, 1000
        %s183 = scalar_lea.vmem [#allocation4], %s182
        %p184 = pneg %p59
        %p185 = pneg %p56
        %p186 = scmp.lt.s32.totalorder %s28, 3
        %s187 = scalar_select %p186, %s28, 3
        %s188 = smul.addr %s187, 16
        %s189 = smul.addr %s188, 8
        %s190 = scalar_lea.vmem %s2, %s189
        %p191 = pneg %p85
        %p192 = pneg %p82
        %p193 = pneg %p113
        %p194 = pneg %p110
        %s195 = sand.u32 %s100, 1
        %s196 = scalar_lea.sflag [#allocation6], %s195
        %s197 = sand.u32 %s100, 1
        %s198 = smul.addr %s197, 1000
        %s199 = scalar_lea.vmem [#allocation7], %s198
        %s200 = smul.u32 125, %s29
        %p201 = scmp.lt.s32.totalorder %s28, 3
        %s202 = scalar_select %p201, %s28, 3
        %s203 = smul.addr %s202, 16
        %s204 = smul.addr %s203, 8
        %s205 = scalar_lea.vmem %s2, %s204
        %s206 = smul.u32 125, %s29
        %s207 = sld [smem:[#allocation3 + %s28]]
        %v208 = vld [vmem:[%s205] sm:$0xff]
        %v209 = vld [vmem:[%s205 + $0x8] sm:$0xff]
        %v210 = vld [vmem:[%s205 + $0x10] sm:$0xff]
        %v211 = vld [vmem:[%s205 + $0x18] sm:$0xff]
        %v212 = vld [vmem:[%s205 + $0x20] sm:$0xff]
        %v213 = vld [vmem:[%s205 + $0x28] sm:$0xff]
        %v214 = vld [vmem:[%s205 + $0x30] sm:$0xff]
        %v215 = vld [vmem:[%s205 + $0x38] sm:$0xff]
        %v216 = vld [vmem:[%s205 + $0x40] sm:$0xff]
        %v217 = vld [vmem:[%s205 + $0x48] sm:$0xff]
        %v218 = vld [vmem:[%s205 + $0x50] sm:$0xff]
        %v219 = vld [vmem:[%s205 + $0x58] sm:$0xff]
        %v220 = vld [vmem:[%s205 + $0x60] sm:$0xff]
        %v221 = vld [vmem:[%s205 + $0x68] sm:$0xff]
        %v222 = vld [vmem:[%s205 + $0x70] sm:$0xff]
        %v223 = vld [vmem:[%s205 + $0x78] sm:$0x1f]
        %v224 = vstv %s207
        %v225 = vmul.f32 %v224, %v208
        %v226 = vmul.f32 %v224, %v209
        %v227 = vmul.f32 %v224, %v210
        %v228 = vmul.f32 %v224, %v211
        %v229 = vmul.f32 %v224, %v212
        %v230 = vmul.f32 %v224, %v213
        %v231 = vmul.f32 %v224, %v214
        %v232 = vmul.f32 %v224, %v215
        %v233 = vmul.f32 %v224, %v216
        %v234 = vmul.f32 %v224, %v217
        %v235 = vmul.f32 %v224, %v218
        %v236 = vmul.f32 %v224, %v219
        %v237 = vmul.f32 %v224, %v220
        %v238 = vmul.f32 %v224, %v221
        %v239 = vmul.f32 %v224, %v222
        %v240 = vmul.f32 %v224, %v223
        %v241 = vld [vmem:[%s174] sm:$0xff]
        %v242 = vld [vmem:[%s174 + $0x8] sm:$0xff]
        %v243 = vld [vmem:[%s174 + $0x10] sm:$0xff]
        %v244 = vld [vmem:[%s174 + $0x18] sm:$0xff]
        %v245 = vld [vmem:[%s174 + $0x20] sm:$0xff]
        %v246 = vld [vmem:[%s174 + $0x28] sm:$0xff]
        %v247 = vld [vmem:[%s174 + $0x30] sm:$0xff]
        %v248 = vld [vmem:[%s174 + $0x38] sm:$0xff]
        %v249 = vld [vmem:[%s174 + $0x40] sm:$0xff]
        %v250 = vld [vmem:[%s174 + $0x48] sm:$0xff]
        %v251 = vld [vmem:[%s174 + $0x50] sm:$0xff]
        %v252 = vld [vmem:[%s174 + $0x58] sm:$0xff]
        %v253 = vld [vmem:[%s174 + $0x60] sm:$0xff]
        %v254 = vld [vmem:[%s174 + $0x68] sm:$0xff]
        %v255 = vld [vmem:[%s174 + $0x70] sm:$0xff]
        %v256 = vld [vmem:[%s174 + $0x78] sm:$0x1f]
        %v257 = vadd.f32 %v241, %v225
        %v258 = vadd.f32 %v242, %v226
        %v259 = vadd.f32 %v243, %v227
        %v260 = vadd.f32 %v244, %v228
        %v261 = vadd.f32 %v245, %v229
        %v262 = vadd.f32 %v246, %v230
        %v263 = vadd.f32 %v247, %v231
        %v264 = vadd.f32 %v248, %v232
        %v265 = vadd.f32 %v249, %v233
        %v266 = vadd.f32 %v250, %v234
        %v267 = vadd.f32 %v251, %v235
        %v268 = vadd.f32 %v252, %v236
        %v269 = vadd.f32 %v253, %v237
        %v270 = vadd.f32 %v254, %v238
        %v271 = vadd.f32 %v255, %v239
        %v272 = vadd.f32 %v256, %v240
        %273 = vst [vmem:[%s199] sm:$0xff] %v257
        %274 = vst [vmem:[%s199 + $0x8] sm:$0xff] %v258
        %275 = vst [vmem:[%s199 + $0x10] sm:$0xff] %v259
        %276 = vst [vmem:[%s199 + $0x18] sm:$0xff] %v260
        %277 = vst [vmem:[%s199 + $0x20] sm:$0xff] %v261
        %278 = vst [vmem:[%s199 + $0x28] sm:$0xff] %v262
        %279 = vst [vmem:[%s199 + $0x30] sm:$0xff] %v263
        %280 = vst [vmem:[%s199 + $0x38] sm:$0xff] %v264
        %281 = vst [vmem:[%s199 + $0x40] sm:$0xff] %v265
        %282 = vst [vmem:[%s199 + $0x48] sm:$0xff] %v266
        %283 = vst [vmem:[%s199 + $0x50] sm:$0xff] %v267
        %284 = vst [vmem:[%s199 + $0x58] sm:$0xff] %v268
        %285 = vst [vmem:[%s199 + $0x60] sm:$0xff] %v269
        %286 = vst [vmem:[%s199 + $0x68] sm:$0xff] %v270
        %287 = vst [vmem:[%s199 + $0x70] sm:$0xff] %v271
        %288 = vst [vmem:[%s199 + $0x78] sm:$0x1f] %v272
        %v289 = vld [vmem:[%s174 + $0x7d] sm:$0xff]
        %v290 = vld [vmem:[%s174 + $0x85] sm:$0xff]
        %v291 = vld [vmem:[%s174 + $0x8d] sm:$0xff]
        %v292 = vld [vmem:[%s174 + $0x95] sm:$0xff]
        %v293 = vld [vmem:[%s174 + $0x9d] sm:$0xff]
        %v294 = vld [vmem:[%s174 + $0xa5] sm:$0xff]
        %v295 = vld [vmem:[%s174 + $0xad] sm:$0xff]
        %v296 = vld [vmem:[%s174 + $0xb5] sm:$0xff]
        %v297 = vld [vmem:[%s174 + $0xbd] sm:$0xff]
        %v298 = vld [vmem:[%s174 + $0xc5] sm:$0xff]
        %v299 = vld [vmem:[%s174 + $0xcd] sm:$0xff]
        %v300 = vld [vmem:[%s174 + $0xd5] sm:$0xff]
        %v301 = vld [vmem:[%s174 + $0xdd] sm:$0xff]
        %v302 = vld [vmem:[%s174 + $0xe5] sm:$0xff]
        %v303 = vld [vmem:[%s174 + $0xed] sm:$0xff]
        %v304 = vld [vmem:[%s174 + $0xf5] sm:$0x1f]
        %v305 = vadd.f32 %v289, %v225
        %v306 = vadd.f32 %v290, %v226
        %v307 = vadd.f32 %v291, %v227
        %v308 = vadd.f32 %v292, %v228
        %v309 = vadd.f32 %v293, %v229
        %v310 = vadd.f32 %v294, %v230
        %v311 = vadd.f32 %v295, %v231
        %v312 = vadd.f32 %v296, %v232
        %v313 = vadd.f32 %v297, %v233
        %v314 = vadd.f32 %v298, %v234
        %v315 = vadd.f32 %v299, %v235
        %v316 = vadd.f32 %v300, %v236
        %v317 = vadd.f32 %v301, %v237
        %v318 = vadd.f32 %v302, %v238
        %v319 = vadd.f32 %v303, %v239
        %v320 = vadd.f32 %v304, %v240
        %321 = vst [vmem:[%s199 + $0x7d] sm:$0xff] %v305
        %322 = vst [vmem:[%s199 + $0x85] sm:$0xff] %v306
        %323 = vst [vmem:[%s199 + $0x8d] sm:$0xff] %v307
        %324 = vst [vmem:[%s199 + $0x95] sm:$0xff] %v308
        %325 = vst [vmem:[%s199 + $0x9d] sm:$0xff] %v309
        %326 = vst [vmem:[%s199 + $0xa5] sm:$0xff] %v310
        %327 = vst [vmem:[%s199 + $0xad] sm:$0xff] %v311
        %328 = vst [vmem:[%s199 + $0xb5] sm:$0xff] %v312
        %329 = vst [vmem:[%s199 + $0xbd] sm:$0xff] %v313
        %330 = vst [vmem:[%s199 + $0xc5] sm:$0xff] %v314
        %331 = vst [vmem:[%s199 + $0xcd] sm:$0xff] %v315
        %332 = vst [vmem:[%s199 + $0xd5] sm:$0xff] %v316
        %333 = vst [vmem:[%s199 + $0xdd] sm:$0xff] %v317
        %334 = vst [vmem:[%s199 + $0xe5] sm:$0xff] %v318
        %335 = vst [vmem:[%s199 + $0xed] sm:$0xff] %v319
        %336 = vst [vmem:[%s199 + $0xf5] sm:$0x1f] %v320
        %v337 = vld [vmem:[%s174 + $0xfa] sm:$0xff]
        %v338 = vld [vmem:[%s174 + $0x102] sm:$0xff]
        %v339 = vld [vmem:[%s174 + $0x10a] sm:$0xff]
        %v340 = vld [vmem:[%s174 + $0x112] sm:$0xff]
        %v341 = vld [vmem:[%s174 + $0x11a] sm:$0xff]
        %v342 = vld [vmem:[%s174 + $0x122] sm:$0xff]
        %v343 = vld [vmem:[%s174 + $0x12a] sm:$0xff]
        %v344 = vld [vmem:[%s174 + $0x132] sm:$0xff]
        %v345 = vld [vmem:[%s174 + $0x13a] sm:$0xff]
        %v346 = vld [vmem:[%s174 + $0x142] sm:$0xff]
        %v347 = vld [vmem:[%s174 + $0x14a] sm:$0xff]
        %v348 = vld [vmem:[%s174 + $0x152] sm:$0xff]
        %v349 = vld [vmem:[%s174 + $0x15a] sm:$0xff]
        %v350 = vld [vmem:[%s174 + $0x162] sm:$0xff]
        %v351 = vld [vmem:[%s174 + $0x16a] sm:$0xff]
        %v352 = vld [vmem:[%s174 + $0x172] sm:$0x1f]
        %v353 = vadd.f32 %v337, %v225
        %v354 = vadd.f32 %v338, %v226
        %v355 = vadd.f32 %v339, %v227
        %v356 = vadd.f32 %v340, %v228
        %v357 = vadd.f32 %v341, %v229
        %v358 = vadd.f32 %v342, %v230
        %v359 = vadd.f32 %v343, %v231
        %v360 = vadd.f32 %v344, %v232
        %v361 = vadd.f32 %v345, %v233
        %v362 = vadd.f32 %v346, %v234
        %v363 = vadd.f32 %v347, %v235
        %v364 = vadd.f32 %v348, %v236
        %v365 = vadd.f32 %v349, %v237
        %v366 = vadd.f32 %v350, %v238
        %v367 = vadd.f32 %v351, %v239
        %v368 = vadd.f32 %v352, %v240
        %369 = vst [vmem:[%s199 + $0xfa] sm:$0xff] %v353
        %370 = vst [vmem:[%s199 + $0x102] sm:$0xff] %v354
        %371 = vst [vmem:[%s199 + $0x10a] sm:$0xff] %v355
        %372 = vst [vmem:[%s199 + $0x112] sm:$0xff] %v356
        %373 = vst [vmem:[%s199 + $0x11a] sm:$0xff] %v357
        %374 = vst [vmem:[%s199 + $0x122] sm:$0xff] %v358
        %375 = vst [vmem:[%s199 + $0x12a] sm:$0xff] %v359
        %376 = vst [vmem:[%s199 + $0x132] sm:$0xff] %v360
        %377 = vst [vmem:[%s199 + $0x13a] sm:$0xff] %v361
        %378 = vst [vmem:[%s199 + $0x142] sm:$0xff] %v362
        %379 = vst [vmem:[%s199 + $0x14a] sm:$0xff] %v363
        %380 = vst [vmem:[%s199 + $0x152] sm:$0xff] %v364
        %381 = vst [vmem:[%s199 + $0x15a] sm:$0xff] %v365
        %382 = vst [vmem:[%s199 + $0x162] sm:$0xff] %v366
        %383 = vst [vmem:[%s199 + $0x16a] sm:$0xff] %v367
        %384 = vst [vmem:[%s199 + $0x172] sm:$0x1f] %v368
        %v385 = vld [vmem:[%s174 + $0x177] sm:$0xff]
        %v386 = vld [vmem:[%s174 + $0x17f] sm:$0xff]
        %v387 = vld [vmem:[%s174 + $0x187] sm:$0xff]
        %v388 = vld [vmem:[%s174 + $0x18f] sm:$0xff]
        %v389 = vld [vmem:[%s174 + $0x197] sm:$0xff]
        %v390 = vld [vmem:[%s174 + $0x19f] sm:$0xff]
        %v391 = vld [vmem:[%s174 + $0x1a7] sm:$0xff]
        %v392 = vld [vmem:[%s174 + $0x1af] sm:$0xff]
        %v393 = vld [vmem:[%s174 + $0x1b7] sm:$0xff]
        %v394 = vld [vmem:[%s174 + $0x1bf] sm:$0xff]
        %v395 = vld [vmem:[%s174 + $0x1c7] sm:$0xff]
        %v396 = vld [vmem:[%s174 + $0x1cf] sm:$0xff]
        %v397 = vld [vmem:[%s174 + $0x1d7] sm:$0xff]
        %v398 = vld [vmem:[%s174 + $0x1df] sm:$0xff]
        %v399 = vld [vmem:[%s174 + $0x1e7] sm:$0xff]
        %v400 = vld [vmem:[%s174 + $0x1ef] sm:$0x1f]
        %v401 = vadd.f32 %v385, %v225
        %v402 = vadd.f32 %v386, %v226
        %v403 = vadd.f32 %v387, %v227
        %v404 = vadd.f32 %v388, %v228
        %v405 = vadd.f32 %v389, %v229
        %v406 = vadd.f32 %v390, %v230
        %v407 = vadd.f32 %v391, %v231
        %v408 = vadd.f32 %v392, %v232
        %v409 = vadd.f32 %v393, %v233
        %v410 = vadd.f32 %v394, %v234
        %v411 = vadd.f32 %v395, %v235
        %v412 = vadd.f32 %v396, %v236
        %v413 = vadd.f32 %v397, %v237
        %v414 = vadd.f32 %v398, %v238
        %v415 = vadd.f32 %v399, %v239
        %v416 = vadd.f32 %v400, %v240
        %417 = vst [vmem:[%s199 + $0x177] sm:$0xff] %v401
        %418 = vst [vmem:[%s199 + $0x17f] sm:$0xff] %v402
        %419 = vst [vmem:[%s199 + $0x187] sm:$0xff] %v403
        %420 = vst [vmem:[%s199 + $0x18f] sm:$0xff] %v404
        %421 = vst [vmem:[%s199 + $0x197] sm:$0xff] %v405
        %422 = vst [vmem:[%s199 + $0x19f] sm:$0xff] %v406
        %423 = vst [vmem:[%s199 + $0x1a7] sm:$0xff] %v407
        %424 = vst [vmem:[%s199 + $0x1af] sm:$0xff] %v408
        %425 = vst [vmem:[%s199 + $0x1b7] sm:$0xff] %v409
        %426 = vst [vmem:[%s199 + $0x1bf] sm:$0xff] %v410
        %427 = vst [vmem:[%s199 + $0x1c7] sm:$0xff] %v411
        %428 = vst [vmem:[%s199 + $0x1cf] sm:$0xff] %v412
        %429 = vst [vmem:[%s199 + $0x1d7] sm:$0xff] %v413
        %430 = vst [vmem:[%s199 + $0x1df] sm:$0xff] %v414
        %431 = vst [vmem:[%s199 + $0x1e7] sm:$0xff] %v415
        %432 = vst [vmem:[%s199 + $0x1ef] sm:$0x1f] %v416
        %v433 = vld [vmem:[%s174 + $0x1f4] sm:$0xff]
        %v434 = vld [vmem:[%s174 + $0x1fc] sm:$0xff]
        %v435 = vld [vmem:[%s174 + $0x204] sm:$0xff]
        %v436 = vld [vmem:[%s174 + $0x20c] sm:$0xff]
        %v437 = vld [vmem:[%s174 + $0x214] sm:$0xff]
        %v438 = vld [vmem:[%s174 + $0x21c] sm:$0xff]
        %v439 = vld [vmem:[%s174 + $0x224] sm:$0xff]
        %v440 = vld [vmem:[%s174 + $0x22c] sm:$0xff]
        %v441 = vld [vmem:[%s174 + $0x234] sm:$0xff]
        %v442 = vld [vmem:[%s174 + $0x23c] sm:$0xff]
        %v443 = vld [vmem:[%s174 + $0x244] sm:$0xff]
        %v444 = vld [vmem:[%s174 + $0x24c] sm:$0xff]
        %v445 = vld [vmem:[%s174 + $0x254] sm:$0xff]
        %v446 = vld [vmem:[%s174 + $0x25c] sm:$0xff]
        %v447 = vld [vmem:[%s174 + $0x264] sm:$0xff]
        %v448 = vld [vmem:[%s174 + $0x26c] sm:$0x1f]
        %v449 = vadd.f32 %v433, %v225
        %v450 = vadd.f32 %v434, %v226
        %v451 = vadd.f32 %v435, %v227
        %v452 = vadd.f32 %v436, %v228
        %v453 = vadd.f32 %v437, %v229
        %v454 = vadd.f32 %v438, %v230
        %v455 = vadd.f32 %v439, %v231
        %v456 = vadd.f32 %v440, %v232
        %v457 = vadd.f32 %v441, %v233
        %v458 = vadd.f32 %v442, %v234
        %v459 = vadd.f32 %v443, %v235
        %v460 = vadd.f32 %v444, %v236
        %v461 = vadd.f32 %v445, %v237
        %v462 = vadd.f32 %v446, %v238
        %v463 = vadd.f32 %v447, %v239
        %v464 = vadd.f32 %v448, %v240
        %465 = vst [vmem:[%s199 + $0x1f4] sm:$0xff] %v449
        %466 = vst [vmem:[%s199 + $0x1fc] sm:$0xff] %v450
        %467 = vst [vmem:[%s199 + $0x204] sm:$0xff] %v451
        %468 = vst [vmem:[%s199 + $0x20c] sm:$0xff] %v452
        %469 = vst [vmem:[%s199 + $0x214] sm:$0xff] %v453
        %470 = vst [vmem:[%s199 + $0x21c] sm:$0xff] %v454
        %471 = vst [vmem:[%s199 + $0x224] sm:$0xff] %v455
        %472 = vst [vmem:[%s199 + $0x22c] sm:$0xff] %v456
        %473 = vst [vmem:[%s199 + $0x234] sm:$0xff] %v457
        %474 = vst [vmem:[%s199 + $0x23c] sm:$0xff] %v458
        %475 = vst [vmem:[%s199 + $0x244] sm:$0xff] %v459
        %476 = vst [vmem:[%s199 + $0x24c] sm:$0xff] %v460
        %477 = vst [vmem:[%s199 + $0x254] sm:$0xff] %v461
        %478 = vst [vmem:[%s199 + $0x25c] sm:$0xff] %v462
        %479 = vst [vmem:[%s199 + $0x264] sm:$0xff] %v463
        %480 = vst [vmem:[%s199 + $0x26c] sm:$0x1f] %v464
        %v481 = vld [vmem:[%s174 + $0x271] sm:$0xff]
        %v482 = vld [vmem:[%s174 + $0x279] sm:$0xff]
        %v483 = vld [vmem:[%s174 + $0x281] sm:$0xff]
        %v484 = vld [vmem:[%s174 + $0x289] sm:$0xff]
        %v485 = vld [vmem:[%s174 + $0x291] sm:$0xff]
        %v486 = vld [vmem:[%s174 + $0x299] sm:$0xff]
        %v487 = vld [vmem:[%s174 + $0x2a1] sm:$0xff]
        %v488 = vld [vmem:[%s174 + $0x2a9] sm:$0xff]
        %v489 = vld [vmem:[%s174 + $0x2b1] sm:$0xff]
        %v490 = vld [vmem:[%s174 + $0x2b9] sm:$0xff]
        %v491 = vld [vmem:[%s174 + $0x2c1] sm:$0xff]
        %v492 = vld [vmem:[%s174 + $0x2c9] sm:$0xff]
        %v493 = vld [vmem:[%s174 + $0x2d1] sm:$0xff]
        %v494 = vld [vmem:[%s174 + $0x2d9] sm:$0xff]
        %v495 = vld [vmem:[%s174 + $0x2e1] sm:$0xff]
        %v496 = vld [vmem:[%s174 + $0x2e9] sm:$0x1f]
        %v497 = vadd.f32 %v481, %v225
        %v498 = vadd.f32 %v482, %v226
        %v499 = vadd.f32 %v483, %v227
        %v500 = vadd.f32 %v484, %v228
        %v501 = vadd.f32 %v485, %v229
        %v502 = vadd.f32 %v486, %v230
        %v503 = vadd.f32 %v487, %v231
        %v504 = vadd.f32 %v488, %v232
        %v505 = vadd.f32 %v489, %v233
        %v506 = vadd.f32 %v490, %v234
        %v507 = vadd.f32 %v491, %v235
        %v508 = vadd.f32 %v492, %v236
        %v509 = vadd.f32 %v493, %v237
        %v510 = vadd.f32 %v494, %v238
        %v511 = vadd.f32 %v495, %v239
        %v512 = vadd.f32 %v496, %v240
        %513 = vst [vmem:[%s199 + $0x271] sm:$0xff] %v497
        %514 = vst [vmem:[%s199 + $0x279] sm:$0xff] %v498
        %515 = vst [vmem:[%s199 + $0x281] sm:$0xff] %v499
        %516 = vst [vmem:[%s199 + $0x289] sm:$0xff] %v500
        %517 = vst [vmem:[%s199 + $0x291] sm:$0xff] %v501
        %518 = vst [vmem:[%s199 + $0x299] sm:$0xff] %v502
        %519 = vst [vmem:[%s199 + $0x2a1] sm:$0xff] %v503
        %520 = vst [vmem:[%s199 + $0x2a9] sm:$0xff] %v504
        %521 = vst [vmem:[%s199 + $0x2b1] sm:$0xff] %v505
        %522 = vst [vmem:[%s199 + $0x2b9] sm:$0xff] %v506
        %523 = vst [vmem:[%s199 + $0x2c1] sm:$0xff] %v507
        %524 = vst [vmem:[%s199 + $0x2c9] sm:$0xff] %v508
        %525 = vst [vmem:[%s199 + $0x2d1] sm:$0xff] %v509
        %526 = vst [vmem:[%s199 + $0x2d9] sm:$0xff] %v510
        %527 = vst [vmem:[%s199 + $0x2e1] sm:$0xff] %v511
        %528 = vst [vmem:[%s199 + $0x2e9] sm:$0x1f] %v512
        %v529 = vld [vmem:[%s174 + $0x2ee] sm:$0xff]
        %v530 = vld [vmem:[%s174 + $0x2f6] sm:$0xff]
        %v531 = vld [vmem:[%s174 + $0x2fe] sm:$0xff]
        %v532 = vld [vmem:[%s174 + $0x306] sm:$0xff]
        %v533 = vld [vmem:[%s174 + $0x30e] sm:$0xff]
        %v534 = vld [vmem:[%s174 + $0x316] sm:$0xff]
        %v535 = vld [vmem:[%s174 + $0x31e] sm:$0xff]
        %v536 = vld [vmem:[%s174 + $0x326] sm:$0xff]
        %v537 = vld [vmem:[%s174 + $0x32e] sm:$0xff]
        %v538 = vld [vmem:[%s174 + $0x336] sm:$0xff]
        %v539 = vld [vmem:[%s174 + $0x33e] sm:$0xff]
        %v540 = vld [vmem:[%s174 + $0x346] sm:$0xff]
        %v541 = vld [vmem:[%s174 + $0x34e] sm:$0xff]
        %v542 = vld [vmem:[%s174 + $0x356] sm:$0xff]
        %v543 = vld [vmem:[%s174 + $0x35e] sm:$0xff]
        %v544 = vld [vmem:[%s174 + $0x366] sm:$0x1f]
        %v545 = vadd.f32 %v529, %v225
        %v546 = vadd.f32 %v530, %v226
        %v547 = vadd.f32 %v531, %v227
        %v548 = vadd.f32 %v532, %v228
        %v549 = vadd.f32 %v533, %v229
        %v550 = vadd.f32 %v534, %v230
        %v551 = vadd.f32 %v535, %v231
        %v552 = vadd.f32 %v536, %v232
        %v553 = vadd.f32 %v537, %v233
        %v554 = vadd.f32 %v538, %v234
        %v555 = vadd.f32 %v539, %v235
        %v556 = vadd.f32 %v540, %v236
        %v557 = vadd.f32 %v541, %v237
        %v558 = vadd.f32 %v542, %v238
        %v559 = vadd.f32 %v543, %v239
        %v560 = vadd.f32 %v544, %v240
        %561 = vst [vmem:[%s199 + $0x2ee] sm:$0xff] %v545
        %562 = vst [vmem:[%s199 + $0x2f6] sm:$0xff] %v546
        %563 = vst [vmem:[%s199 + $0x2fe] sm:$0xff] %v547
        %564 = vst [vmem:[%s199 + $0x306] sm:$0xff] %v548
        %565 = vst [vmem:[%s199 + $0x30e] sm:$0xff] %v549
        %566 = vst [vmem:[%s199 + $0x316] sm:$0xff] %v550
        %567 = vst [vmem:[%s199 + $0x31e] sm:$0xff] %v551
        %568 = vst [vmem:[%s199 + $0x326] sm:$0xff] %v552
        %569 = vst [vmem:[%s199 + $0x32e] sm:$0xff] %v553
        %570 = vst [vmem:[%s199 + $0x336] sm:$0xff] %v554
        %571 = vst [vmem:[%s199 + $0x33e] sm:$0xff] %v555
        %572 = vst [vmem:[%s199 + $0x346] sm:$0xff] %v556
        %573 = vst [vmem:[%s199 + $0x34e] sm:$0xff] %v557
        %574 = vst [vmem:[%s199 + $0x356] sm:$0xff] %v558
        %575 = vst [vmem:[%s199 + $0x35e] sm:$0xff] %v559
        %576 = vst [vmem:[%s199 + $0x366] sm:$0x1f] %v560
        %v577 = vld [vmem:[%s174 + $0x36b] sm:$0xff]
        %v578 = vld [vmem:[%s174 + $0x373] sm:$0xff]
        %v579 = vld [vmem:[%s174 + $0x37b] sm:$0xff]
        %v580 = vld [vmem:[%s174 + $0x383] sm:$0xff]
        %v581 = vld [vmem:[%s174 + $0x38b] sm:$0xff]
        %v582 = vld [vmem:[%s174 + $0x393] sm:$0xff]
        %v583 = vld [vmem:[%s174 + $0x39b] sm:$0xff]
        %v584 = vld [vmem:[%s174 + $0x3a3] sm:$0xff]
        %v585 = vld [vmem:[%s174 + $0x3ab] sm:$0xff]
        %v586 = vld [vmem:[%s174 + $0x3b3] sm:$0xff]
        %v587 = vld [vmem:[%s174 + $0x3bb] sm:$0xff]
        %v588 = vld [vmem:[%s174 + $0x3c3] sm:$0xff]
        %v589 = vld [vmem:[%s174 + $0x3cb] sm:$0xff]
        %v590 = vld [vmem:[%s174 + $0x3d3] sm:$0xff]
        %v591 = vld [vmem:[%s174 + $0x3db] sm:$0xff]
        %v592 = vld [vmem:[%s174 + $0x3e3] sm:$0x1f]
        %v593 = vadd.f32 %v577, %v225
        %v594 = vadd.f32 %v578, %v226
        %v595 = vadd.f32 %v579, %v227
        %v596 = vadd.f32 %v580, %v228
        %v597 = vadd.f32 %v581, %v229
        %v598 = vadd.f32 %v582, %v230
        %v599 = vadd.f32 %v583, %v231
        %v600 = vadd.f32 %v584, %v232
        %v601 = vadd.f32 %v585, %v233
        %v602 = vadd.f32 %v586, %v234
        %v603 = vadd.f32 %v587, %v235
        %v604 = vadd.f32 %v588, %v236
        %v605 = vadd.f32 %v589, %v237
        %v606 = vadd.f32 %v590, %v238
        %v607 = vadd.f32 %v591, %v239
        %v608 = vadd.f32 %v592, %v240
        %609 = vst [vmem:[%s199 + $0x36b] sm:$0xff] %v593
        %610 = vst [vmem:[%s199 + $0x373] sm:$0xff] %v594
        %611 = vst [vmem:[%s199 + $0x37b] sm:$0xff] %v595
        %612 = vst [vmem:[%s199 + $0x383] sm:$0xff] %v596
        %613 = vst [vmem:[%s199 + $0x38b] sm:$0xff] %v597
        %614 = vst [vmem:[%s199 + $0x393] sm:$0xff] %v598
        %615 = vst [vmem:[%s199 + $0x39b] sm:$0xff] %v599
        %616 = vst [vmem:[%s199 + $0x3a3] sm:$0xff] %v600
        %617 = vst [vmem:[%s199 + $0x3ab] sm:$0xff] %v601
        %618 = vst [vmem:[%s199 + $0x3b3] sm:$0xff] %v602
        %619 = vst [vmem:[%s199 + $0x3bb] sm:$0xff] %v603
        %620 = vst [vmem:[%s199 + $0x3c3] sm:$0xff] %v604
        %621 = vst [vmem:[%s199 + $0x3cb] sm:$0xff] %v605
        %622 = vst [vmem:[%s199 + $0x3d3] sm:$0xff] %v606
        %623 = vst [vmem:[%s199 + $0x3db] sm:$0xff] %v607
        %624 = vst [vmem:[%s199 + $0x3e3] sm:$0x1f] %v608
        %s625 = sand.u32 %s100, 1
        %s626 = scalar_lea.sflag [#allocation6], %s625
        %s627 = sand.u32 %s100, 1
        %s628 = smul.addr %s627, 1000
        %s629 = scalar_lea.vmem [#allocation7], %s628
        // Predicated region
        $region33: #{tpu_custom_call.1} parent=27 // pred_check
          %p630 = pneg %p110
        $region34: #{tpu_custom_call.1} parent=27 // pred_check_branch
          %632 = sbr.rel (%p630) target = $region36
        $region35: #{tpu_custom_call.1} parent=27 // pred_region
          %s633 = smul.u32 125, %s29
          %s635 = ssub.s32 16000, 16000
          %636 = vsyncadd %s626, %s635
          %s637 = smul.addr %s28, 125
          %s638 = sadd.s32 %s633, %s637
          %s639 = smul.addr %s638, 128
          %s640 = scalar_lea.hbm %s3, %s639
          %s641 = sshll.u32 %s629, 4
          %s642 = int_to_ptr.vmem [resolvable:$true] %s641
          %647 = dma.vmem_to_hbm [thread:$0]  %s642, 16000, %s640, %s626, 128, 128, 8
        $region36: #{tpu_custom_call.1} parent=27 // pred_fallthru
          _
      $region28: #{tpu_custom_call.1} parent=5 // pred_fallthru
        _
      %p648 = scmp.le.s32.totalorder 2, %s19
      // Predicated region
      $region37: #{tpu_custom_call.1} parent=5 // pred_check
        %p649 = pneg %p648
      $region38: #{tpu_custom_call.1} parent=5 // pred_check_branch
        %651 = sbr.rel (%p649) target = $region40
      $region39: #{tpu_custom_call.1} parent=5 // pred_region
        %s652 = ssub.s32 %s19, 2
        // Predicated region
        $region41: #{tpu_custom_call.1} parent=39 // pred_check
          %p653 = pneg %p116
        $region42: #{tpu_custom_call.1} parent=39 // pred_check_branch
          %655 = sbr.rel (%p653) target = $region44
        $region43: #{tpu_custom_call.1} parent=39 // pred_region
          %s656 = sand.u32 %s101, 1
          %s657 = scalar_lea.sflag [#allocation6], %s656
          %s658 = sand.u32 %s101, 1
          %s659 = smul.addr %s658, 1000
          %s660 = scalar_lea.vmem [#allocation7], %s659
          %661 = dma.done %s657, 16000
        $region44: #{tpu_custom_call.1} parent=39 // pred_fallthru
          _
      $region40: #{tpu_custom_call.1} parent=5 // pred_fallthru
        _
    $region6: #{tpu_custom_call.1} parent=1 // loop_footer
      %s23 = sadd.s32 1, %s19
    $region7: #{tpu_custom_call.1} parent=1 // loop_footer_branch
      %18 = sbr.rel target = $region3
    $region8: #{tpu_custom_call.1} parent=1 // loop_exit
      _
    %662 = vsyncpa [#allocation5], 1
    %s663 = scalar_lea.sflag [#allocation5], 1
    %664 = vsyncpa %s663, 1
    %665 = vsyncpa [#allocation6], 1
    %s666 = scalar_lea.sflag [#allocation6], 1
    %667 = vsyncpa %s666, 1

</llo_original>
